<compile_context>
chip_gen: v7x
topology: tpu7x:2x2x1
jax: 0.10.0
libtpu: 0.0.40
codegen_flags: <defaults>
</compile_context>

<pallas_src>
import math

import jax
import jax.numpy as jnp
from jax.experimental import pallas as pl
from jax.experimental.pallas import tpu as pltpu


LOG_STD_MIN = -20.0
LOG_STD_MAX = 2.0


def _round_up(n, m):
    return ((n + m - 1) // m) * m


def _cdiv(a, b):
    return -(-a // b)


def actor_kernel(x_ref, w1_ref, b1_ref, w2_ref, b2_ref, w34_ref, b34_ref, out_ref):
    x = x_ref[...]          # [TB, in]  (MXU dtype, e.g. bf16)
    w1 = w1_ref[...]
    w2 = w2_ref[...]
    w34 = w34_ref[...]
    mxu_dtype = w1.dtype

    # fc1 + relu  (MXU matmul in bf16, accumulate/bias/relu in f32)
    h1 = jnp.dot(x, w1, preferred_element_type=jnp.float32) + b1_ref[...]
    h1 = jnp.maximum(h1, 0.0).astype(mxu_dtype)

    # fc2 + relu
    h2 = jnp.dot(h1, w2, preferred_element_type=jnp.float32) + b2_ref[...]
    h2 = jnp.maximum(h2, 0.0).astype(mxu_dtype)

    # fused fc3|fc4 -> [TB, 2*OP]  (first half = mean, second half = log_std pre-act)
    y = jnp.dot(h2, w34, preferred_element_type=jnp.float32) + b34_ref[...]

    two_op = y.shape[1]
    op = two_op // 2
    if op % 128 == 0:
        # Lane-aligned halves: static slices are free; run clip/exp only on the
        # std half (halves EUP work once the matmuls are bf16).
        out_ref[:, :op] = y[:, :op].astype(out_ref.dtype)
        out_ref[:, op:] = jnp.exp(
            jnp.clip(y[:, op:], LOG_STD_MIN, LOG_STD_MAX)).astype(out_ref.dtype)
    else:
        # OP not a lane multiple: per-lane select.  Mask comes from a single
        # (1, 2*OP) iota row (one vreg) and broadcasts; exp(clip(.)) computed on
        # the discarded mean lanes is bounded (<= e^2) so the select is finite.
        col = jax.lax.broadcasted_iota(jnp.int32, (1, two_op), 1)
        std_branch = jnp.exp(jnp.clip(y, LOG_STD_MIN, LOG_STD_MAX))
        out_ref[...] = jnp.where(col >= op, std_branch, y).astype(out_ref.dtype)


def prepare_actor_params(params, *, mxu_dtype=jnp.bfloat16):
    """Pad / fuse / cast weights ONCE.  Cache the result; do not redo per step.

    Zero-padding the hidden width is numerically exact: padded units have zero
    weights/bias -> relu(0) = 0 -> contribute nothing downstream.
    """
    in_size, hidden = params["w1"].shape
    out_size = params["w3"].shape[1]
    HP = _round_up(hidden, 128)        # lane-dense hidden width
    OP = _round_up(out_size, 64)       # per-head width; 2*OP is a multiple of 128

    def pad2(a, rows, cols):
        return jnp.pad(a, ((0, rows - a.shape[0]), (0, cols - a.shape[1])))

    w1p = pad2(params["w1"], in_size, HP).astype(mxu_dtype)
    b1p = pad2(params["b1"], 1, HP).astype(jnp.float32)
    w2p = pad2(params["w2"], HP, HP).astype(mxu_dtype)
    b2p = pad2(params["b2"], 1, HP).astype(jnp.float32)
    # Fused output projection [HP, 2*OP] = [W3_pad | W4_pad] -> one MXU pass.
    w34 = jnp.concatenate([pad2(params["w3"], HP, OP),
                           pad2(params["w4"], HP, OP)], axis=1).astype(mxu_dtype)
    b34 = jnp.concatenate([pad2(params["b3"], 1, OP),
                           pad2(params["b4"], 1, OP)], axis=1).astype(jnp.float32)

    return {
        "w1p": w1p, "b1p": b1p, "w2p": w2p, "b2p": b2p, "w34": w34, "b34": b34,
        "in_size": in_size, "hidden": hidden, "out_size": out_size,
        "HP": HP, "OP": OP, "mxu_dtype": mxu_dtype,
    }


def _batch_dim_semantics():
    # v7x has 2 TensorCores/chip: shard the batch grid axis across them.
    # Plain "parallel" vs "arbitrary" is measured near-zero; only CORE_PARALLEL
    # changes codegen.  Gated to v7x so v5e/v6e compile with the default.
    try:
        kind = jax.devices()[0].device_kind.lower()
    except Exception:
        kind = ""
    if "v7" in kind:
        return (pltpu.CORE_PARALLEL,)
    return ("parallel",)


def actor_forward(x, prepped, *, batch_tile=1024, out_dtype=jnp.float32):
    """Actor MLP forward pass as one Pallas kernel.

    x: [B, input_size] float32
    prepped: output of prepare_actor_params(params)
    returns: (mean [B, out_size] f32, std [B, out_size] f32)
    """
    B, in_size = x.shape
    assert in_size == prepped["in_size"]
    HP, OP = prepped["HP"], prepped["OP"]
    out_size = prepped["out_size"]
    mxu_dtype = prepped["mxu_dtype"]

    # Adaptive batch tiling: fix the number of (fat) grid steps first, then the
    # smallest sublane-aligned tile covering B.  Avoids the round_up(B, TB)
    # cliff (e.g. B=520 no longer pads to 1024 rows of wasted work).
    n_tiles = max(1, _cdiv(B, batch_tile))
    TB = _round_up(_cdiv(B, n_tiles), 8)
    B_pad = n_tiles * TB
    x_p = x if B_pad == B else jnp.pad(x, ((0, B_pad - B), (0, 0)))
    x_p = x_p.astype(mxu_dtype)

    out = pl.pallas_call(
        actor_kernel,
        out_shape=jax.ShapeDtypeStruct((B_pad, 2 * OP), out_dtype),
        grid=(n_tiles,),
        in_specs=[
            pl.BlockSpec((TB, in_size), lambda i: (i, 0)),      # x: tile over batch
            # Weights/biases are grid-invariant -> stay VMEM-resident.
            pl.BlockSpec((in_size, HP), lambda i: (0, 0)),
            pl.BlockSpec((1, HP), lambda i: (0, 0)),
            pl.BlockSpec((HP, HP), lambda i: (0, 0)),
            pl.BlockSpec((1, HP), lambda i: (0, 0)),
            pl.BlockSpec((HP, 2 * OP), lambda i: (0, 0)),
            pl.BlockSpec((1, 2 * OP), lambda i: (0, 0)),
        ],
        out_specs=pl.BlockSpec((TB, 2 * OP), lambda i: (i, 0)),  # packed mean||std
        compiler_params=pltpu.CompilerParams(
            dimension_semantics=_batch_dim_semantics()),
    )(x_p, prepped["w1p"], prepped["b1p"], prepped["w2p"], prepped["b2p"],
      prepped["w34"], prepped["b34"])

    mean = out[:B, :out_size]
    std = out[:B, OP:OP + out_size]
    return mean, std


def init_actor_params(key, input_size, hidden, output_size):
    """Deterministic init matching the PyTorch module:
       fc1, fc2: kaiming_normal_ (he normal, fan_in, gain=sqrt(2)), zero bias
       fc3, fc4: xavier_uniform_, zero bias
       Weights stored transposed ([in, out]) relative to nn.Linear."""
    k1, k2, k3, k4 = jax.random.split(key, 4)

    def he_normal(k, fan_in, fan_out):
        std = math.sqrt(2.0 / fan_in)
        return jax.random.normal(k, (fan_in, fan_out), dtype=jnp.float32) * std

    def xavier_uniform(k, fan_in, fan_out):
        bound = math.sqrt(6.0 / (fan_in + fan_out))
        return jax.random.uniform(k, (fan_in, fan_out), dtype=jnp.float32,
                                  minval=-bound, maxval=bound)

    return {
        "w1": he_normal(k1, input_size, hidden),
        "b1": jnp.zeros((1, hidden), jnp.float32),
        "w2": he_normal(k2, hidden, hidden),
        "b2": jnp.zeros((1, hidden), jnp.float32),
        "w3": xavier_uniform(k3, hidden, output_size),
        "b3": jnp.zeros((1, output_size), jnp.float32),
        "w4": xavier_uniform(k4, hidden, output_size),
        "b4": jnp.zeros((1, output_size), jnp.float32),
    }


def actor_forward_ref(x, p):
    """Pure-JAX f32 reference for correctness checking."""
    h1 = jax.nn.relu(x @ p["w1"] + p["b1"])
    h2 = jax.nn.relu(h1 @ p["w2"] + p["b2"])
    mean = h2 @ p["w3"] + p["b3"]
    log_std = jnp.clip(h2 @ p["w4"] + p["b4"], LOG_STD_MIN, LOG_STD_MAX)
    return mean, jnp.exp(log_std)


if __name__ == "__main__":
    # Small shapes consistent with the module's forward (x: [batch, input_size]).
    batch, input_size, hidden, output_size = 8, 16, 32, 8

    key = jax.random.PRNGKey(0)
    k_params, k_x, k_x2 = jax.random.split(key, 3)

    params = init_actor_params(k_params, input_size, hidden, output_size)
    prepped = prepare_actor_params(params)          # pad/fuse/cast once, reuse
    x = jax.random.normal(k_x, (batch, input_size), dtype=jnp.float32)

    mean, std = actor_forward(x, prepped)
    jax.block_until_ready((mean, std))

    # bf16 MXU operands vs f32 reference -> relaxed tolerance (accuracy policy:
    # fine for an RL actor).
    mean_ref, std_ref = actor_forward_ref(x, params)
    assert mean.shape == (batch, output_size) and std.shape == (batch, output_size)
    assert jnp.allclose(mean, mean_ref, atol=3e-2, rtol=3e-2)
    assert jnp.allclose(std, std_ref, atol=3e-2, rtol=3e-2)
    assert bool(jnp.all(std > 0))

    # Second check: batch not a multiple of the sublane/tile size exercises the
    # batch pad/slice path.
    x2 = jax.random.normal(k_x2, (13, input_size), dtype=jnp.float32)
    mean2, std2 = actor_forward(x2, prepped)
    jax.block_until_ready((mean2, std2))
    mean2_ref, std2_ref = actor_forward_ref(x2, params)
    assert mean2.shape == (13, output_size) and std2.shape == (13, output_size)
    assert jnp.allclose(mean2, mean2_ref, atol=3e-2, rtol=3e-2)
    assert jnp.allclose(std2, std2_ref, atol=3e-2, rtol=3e-2)

    # TODO(synk): get_action / evaluate (Normal.rsample, tanh-squash log-prob)
    # are sampling-time utilities, not part of forward(); not implemented here.

    print("KERNEL_OK")
</pallas_src>

<mosaic_0001>
module attributes {stable_mosaic.version = 11 : i64} {
  func.func @actor_kernel(%arg0: i32, %arg1: memref<8x16xbf16, #tpu.memory_space<vmem>>, %arg2: memref<16x128xbf16, #tpu.memory_space<vmem>>, %arg3: memref<1x128xf32, #tpu.memory_space<vmem>>, %arg4: memref<128x128xbf16, #tpu.memory_space<vmem>>, %arg5: memref<1x128xf32, #tpu.memory_space<vmem>>, %arg6: memref<128x128xbf16, #tpu.memory_space<vmem>>, %arg7: memref<1x128xf32, #tpu.memory_space<vmem>>, %arg8: memref<8x128xf32, #tpu.memory_space<vmem>>) attributes {dimension_semantics = [#tpu.dimension_semantics<parallel>], iteration_bounds = array<i64: 1>, scalar_prefetch = 0 : i64, scratch_operands = 0 : i64, tpu.core_type = #tpu.core_type<tc>, window_params = [{transform_indices = @transform_0, window_bounds = array<i64: 8, 16>}, {pipeline_mode = #tpu.pipeline_mode<synchronous>, transform_indices = @transform_1, window_bounds = array<i64: 16, 128>}, {pipeline_mode = #tpu.pipeline_mode<synchronous>, transform_indices = @transform_2, window_bounds = array<i64: 1, 128>}, {pipeline_mode = #tpu.pipeline_mode<synchronous>, transform_indices = @transform_3, window_bounds = array<i64: 128, 128>}, {pipeline_mode = #tpu.pipeline_mode<synchronous>, transform_indices = @transform_4, window_bounds = array<i64: 1, 128>}, {pipeline_mode = #tpu.pipeline_mode<synchronous>, transform_indices = @transform_5, window_bounds = array<i64: 128, 128>}, {pipeline_mode = #tpu.pipeline_mode<synchronous>, transform_indices = @transform_6, window_bounds = array<i64: 1, 128>}, {transform_indices = @transform_7, window_bounds = array<i64: 8, 128>}]} {
    %c0 = arith.constant 0 : index
    %c0_0 = arith.constant 0 : index
    %0 = vector.load %arg1[%c0, %c0_0] : memref<8x16xbf16, #tpu.memory_space<vmem>>, vector<8x16xbf16>
    %c0_1 = arith.constant 0 : index
    %c0_2 = arith.constant 0 : index
    %1 = vector.load %arg2[%c0_1, %c0_2] : memref<16x128xbf16, #tpu.memory_space<vmem>>, vector<16x128xbf16>
    %c0_3 = arith.constant 0 : index
    %c0_4 = arith.constant 0 : index
    %2 = vector.load %arg4[%c0_3, %c0_4] : memref<128x128xbf16, #tpu.memory_space<vmem>>, vector<128x128xbf16>
    %c0_5 = arith.constant 0 : index
    %c0_6 = arith.constant 0 : index
    %3 = vector.load %arg6[%c0_5, %c0_6] : memref<128x128xbf16, #tpu.memory_space<vmem>>, vector<128x128xbf16>
    %cst = arith.constant dense<0.000000e+00> : vector<8x128xf32>
    %4 = tpu.matmul %0, %1, %cst {dimension_numbers = #tpu.dot_dimension_numbers<[1], [0], [0], [1], [0, 0, 1, 1], [], []>} : vector<8x16xbf16>, vector<16x128xbf16>, vector<8x128xf32> -> vector<8x128xf32>
    %c0_7 = arith.constant 0 : index
    %c0_8 = arith.constant 0 : index
    %5 = vector.load %arg3[%c0_7, %c0_8] : memref<1x128xf32, #tpu.memory_space<vmem>>, vector<1x128xf32>
    %6 = vector.broadcast %5 : vector<1x128xf32> to vector<8x128xf32>
    %7 = arith.addf %4, %6 : vector<8x128xf32>
    %cst_9 = arith.constant 0.000000e+00 : f32
    %8 = vector.broadcast %cst_9 : f32 to vector<8x128xf32>
    %9 = arith.maximumf %7, %8 : vector<8x128xf32>
    %10 = arith.truncf %9 : vector<8x128xf32> to vector<8x128xbf16>
    %cst_10 = arith.constant dense<0.000000e+00> : vector<8x128xf32>
    %11 = tpu.matmul %10, %2, %cst_10 {dimension_numbers = #tpu.dot_dimension_numbers<[1], [0], [0], [1], [0, 0, 1, 1], [], []>} : vector<8x128xbf16>, vector<128x128xbf16>, vector<8x128xf32> -> vector<8x128xf32>
    %c0_11 = arith.constant 0 : index
    %c0_12 = arith.constant 0 : index
    %12 = vector.load %arg5[%c0_11, %c0_12] : memref<1x128xf32, #tpu.memory_space<vmem>>, vector<1x128xf32>
    %13 = vector.broadcast %12 : vector<1x128xf32> to vector<8x128xf32>
    %14 = arith.addf %11, %13 : vector<8x128xf32>
    %cst_13 = arith.constant 0.000000e+00 : f32
    %15 = vector.broadcast %cst_13 : f32 to vector<8x128xf32>
    %16 = arith.maximumf %14, %15 : vector<8x128xf32>
    %17 = arith.truncf %16 : vector<8x128xf32> to vector<8x128xbf16>
    %cst_14 = arith.constant dense<0.000000e+00> : vector<8x128xf32>
    %18 = tpu.matmul %17, %3, %cst_14 {dimension_numbers = #tpu.dot_dimension_numbers<[1], [0], [0], [1], [0, 0, 1, 1], [], []>} : vector<8x128xbf16>, vector<128x128xbf16>, vector<8x128xf32> -> vector<8x128xf32>
    %c0_15 = arith.constant 0 : index
    %c0_16 = arith.constant 0 : index
    %19 = vector.load %arg7[%c0_15, %c0_16] : memref<1x128xf32, #tpu.memory_space<vmem>>, vector<1x128xf32>
    %20 = vector.broadcast %19 : vector<1x128xf32> to vector<8x128xf32>
    %21 = arith.addf %18, %20 : vector<8x128xf32>
    %22 = tpu.iota {dimensions = array<i32: 1>} : vector<1x128xi32>
    %cst_17 = arith.constant -2.000000e+01 : f32
    %cst_18 = arith.constant 2.000000e+00 : f32
    %23 = vector.broadcast %cst_17 : f32 to vector<8x128xf32>
    %24 = arith.maximumf %23, %21 : vector<8x128xf32>
    %25 = vector.broadcast %cst_18 : f32 to vector<8x128xf32>
    %26 = arith.minimumf %25, %24 : vector<8x128xf32>
    %27 = math.exp %26 : vector<8x128xf32>
    %c64_i32 = arith.constant 64 : i32
    %28 = vector.broadcast %c64_i32 : i32 to vector<1x128xi32>
    %29 = arith.cmpi sge, %22, %28 : vector<1x128xi32>
    %30 = vector.shape_cast %29 : vector<1x128xi1> to vector<1x128xi1>
    %31 = vector.broadcast %30 : vector<1x128xi1> to vector<8x128xi1>
    %32 = arith.select %31, %27, %21 : vector<8x128xi1>, vector<8x128xf32>
    %c0_19 = arith.constant 0 : index
    %c0_20 = arith.constant 0 : index
    %33 = vector.load %arg8[%c0_19, %c0_20] : memref<8x128xf32, #tpu.memory_space<vmem>>, vector<8x128xf32>
    tpu.vector_store %arg8[%c0_19, %c0_20], %32 {strides = array<i32>} : memref<8x128xf32, #tpu.memory_space<vmem>>, vector<8x128xf32>,
    return
  }
  func.func @transform_0(%arg0: i32) -> (i32, i32) {
    %c0_i32 = arith.constant 0 : i32
    %c0_i32_0 = arith.constant 0 : i32
    return %arg0, %c0_i32 : i32, i32
  }
  func.func @transform_1(%arg0: i32) -> (i32, i32) {
    %c0_i32 = arith.constant 0 : i32
    %c0_i32_0 = arith.constant 0 : i32
    %c0_i32_1 = arith.constant 0 : i32
    return %c0_i32, %c0_i32_0 : i32, i32
  }
  func.func @transform_2(%arg0: i32) -> (i32, i32) {
    %c0_i32 = arith.constant 0 : i32
    %c0_i32_0 = arith.constant 0 : i32
    %c0_i32_1 = arith.constant 0 : i32
    return %c0_i32, %c0_i32_0 : i32, i32
  }
  func.func @transform_3(%arg0: i32) -> (i32, i32) {
    %c0_i32 = arith.constant 0 : i32
    %c0_i32_0 = arith.constant 0 : i32
    %c0_i32_1 = arith.constant 0 : i32
    return %c0_i32, %c0_i32_0 : i32, i32
  }
  func.func @transform_4(%arg0: i32) -> (i32, i32) {
    %c0_i32 = arith.constant 0 : i32
    %c0_i32_0 = arith.constant 0 : i32
    %c0_i32_1 = arith.constant 0 : i32
    return %c0_i32, %c0_i32_0 : i32, i32
  }
  func.func @transform_5(%arg0: i32) -> (i32, i32) {
    %c0_i32 = arith.constant 0 : i32
    %c0_i32_0 = arith.constant 0 : i32
    %c0_i32_1 = arith.constant 0 : i32
    return %c0_i32, %c0_i32_0 : i32, i32
  }
  func.func @transform_6(%arg0: i32) -> (i32, i32) {
    %c0_i32 = arith.constant 0 : i32
    %c0_i32_0 = arith.constant 0 : i32
    %c0_i32_1 = arith.constant 0 : i32
    return %c0_i32, %c0_i32_0 : i32, i32
  }
  func.func @transform_7(%arg0: i32) -> (i32, i32) {
    %c0_i32 = arith.constant 0 : i32
    %c0_i32_0 = arith.constant 0 : i32
    return %arg0, %c0_i32 : i32, i32
  }
}

</mosaic_0001>

<llo_original>
// kernel: tpu_custom_call.1
$region0: #{tpu_custom_call.1}
  #allocation0 [shape = 'u32[]', space=smem, size = 0x4, offset = 0x4, fixed_abs, tag = 'smem constant byte address 0x4 - core index']
  #allocation1 [shape = 'u32[144,128]{1,0:T(1,128)}', space=vmem, size = 0x12000, scoped, tag = 'internal scratch']
  %s0 = inlined_call_operand.hbm [shape: bf16[8,16], index: 0, kind: input, shape index: {}]
  %s1 = inlined_call_operand.hbm [shape: bf16[16,128], index: 1, kind: input, shape index: {}]
  %s2 = inlined_call_operand.vmem [shape: f32[1,128], index: 2, kind: input, shape index: {}]
  %s3 = inlined_call_operand.hbm [shape: bf16[128,128], index: 3, kind: input, shape index: {}]
  %s4 = inlined_call_operand.vmem [shape: f32[1,128], index: 4, kind: input, shape index: {}]
  %s5 = inlined_call_operand.hbm [shape: bf16[128,128], index: 5, kind: input, shape index: {}]
  %s6 = inlined_call_operand.vmem [shape: f32[1,128], index: 6, kind: input, shape index: {}]
  %s7 = inlined_call_operand.hbm [shape: f32[8,128], index: 7, kind: output, shape index: {}]
  %s8 = sld [smem:[#allocation0]]
  $region54: #{tpu_custom_call.1} parent=0
    _
  %s10 = ssub.s32 1, %s8
  %s11 = scalar_select 0, %s10, %s8
  $region1: #{tpu_custom_call.1} parent=0
    #allocation2 [shape = 'u8[2048]{0}', space=vmem, size = 0x800, scoped, tag = 'input window, operand 0, single buffered']
    #allocation3 [shape = 's32[1]{0}', space=sflag, size = 0x4, scoped, tag = 'scoped memory for tpu_custom_call.1']
    #allocation4 [shape = 's32[1]{0}', space=sflag, size = 0x4, scoped, tag = 'scoped memory for tpu_custom_call.1']
    #allocation5 [shape = 'u8[4096]{0}', space=vmem, size = 0x1000, scoped, tag = 'input window, operand 1, single buffered']
    #allocation6 [shape = 's32[1]{0}', space=sflag, size = 0x4, scoped, tag = 'scoped memory for tpu_custom_call.1']
    #allocation7 [shape = 'u8[32768]{0}', space=vmem, size = 0x8000, scoped, tag = 'input window, operand 3, single buffered']
    #allocation8 [shape = 'u8[32768]{0}', space=vmem, size = 0x8000, scoped, tag = 'input window, operand 5, single buffered']
    #allocation9 [shape = 's32[1]{0}', space=sflag, size = 0x4, scoped, tag = 'scoped memory for tpu_custom_call.1']
    #allocation10 [shape = 'u8[4096]{0}', space=vmem, size = 0x1000, scoped, tag = 'output window, operand 0, single buffered']
    %12 = vsyncpa [#allocation3], 0
    %13 = vsyncpa [#allocation6], 0
    %14 = vsyncpa [#allocation9], 0
    %15 = vsyncpa [#allocation4], 0
    // Predicated region
    $region2: #{tpu_custom_call.1} parent=1 // pred_check
      _
    $region3: #{tpu_custom_call.1} parent=1 // pred_check_branch
      %17 = sbr.rel (0) target = $region5
    $region4: #{tpu_custom_call.1} parent=1 // pred_region
      %s19 = ssub.s32 64, 64
      %20 = vsyncadd [#allocation3], %s19
      %s22 = sshll.u32 [#allocation2], 4
      %s23 = int_to_ptr.vmem [resolvable:$true] %s22
      %25 = dma.hbm_to_vmem [thread:$0]  %s0, 64, %s23, [#allocation3]
    $region5: #{tpu_custom_call.1} parent=1 // pred_fallthru
      _
    // Predicated region
    $region6: #{tpu_custom_call.1} parent=1 // pred_check
      _
    $region7: #{tpu_custom_call.1} parent=1 // pred_check_branch
      %27 = sbr.rel (0) target = $region9
    $region8: #{tpu_custom_call.1} parent=1 // pred_region
      %s29 = ssub.s32 128, 128
      %30 = vsyncadd [#allocation6], %s29
      %s31 = sshll.u32 [#allocation5], 4
      %s32 = int_to_ptr.vmem [resolvable:$true] %s31
      %37 = dma.hbm_to_vmem [thread:$0]  %s1, 128, %s32, [#allocation6], 64, 64, 4
    $region9: #{tpu_custom_call.1} parent=1 // pred_fallthru
      _
    // Predicated region
    $region10: #{tpu_custom_call.1} parent=1 // pred_check
      _
    $region11: #{tpu_custom_call.1} parent=1 // pred_check_branch
      %39 = sbr.rel (0) target = $region13
    $region12: #{tpu_custom_call.1} parent=1 // pred_region
      _
    $region13: #{tpu_custom_call.1} parent=1 // pred_fallthru
      _
    // Predicated region
    $region14: #{tpu_custom_call.1} parent=1 // pred_check
      _
    $region15: #{tpu_custom_call.1} parent=1 // pred_check_branch
      %41 = sbr.rel (0) target = $region17
    $region16: #{tpu_custom_call.1} parent=1 // pred_region
      %s43 = ssub.s32 1024, 1024
      %44 = vsyncadd [#allocation6], %s43
      %s45 = sshll.u32 [#allocation7], 4
      %s46 = int_to_ptr.vmem [resolvable:$true] %s45
      %51 = dma.hbm_to_vmem [thread:$0]  %s3, 1024, %s46, [#allocation6], 64, 64, 4
    $region17: #{tpu_custom_call.1} parent=1 // pred_fallthru
      _
    // Predicated region
    $region18: #{tpu_custom_call.1} parent=1 // pred_check
      _
    $region19: #{tpu_custom_call.1} parent=1 // pred_check_branch
      %53 = sbr.rel (0) target = $region21
    $region20: #{tpu_custom_call.1} parent=1 // pred_region
      _
    $region21: #{tpu_custom_call.1} parent=1 // pred_fallthru
      _
    // Predicated region
    $region22: #{tpu_custom_call.1} parent=1 // pred_check
      _
    $region23: #{tpu_custom_call.1} parent=1 // pred_check_branch
      %55 = sbr.rel (0) target = $region25
    $region24: #{tpu_custom_call.1} parent=1 // pred_region
      %s57 = ssub.s32 1024, 1024
      %58 = vsyncadd [#allocation9], %s57
      %s59 = sshll.u32 [#allocation8], 4
      %s60 = int_to_ptr.vmem [resolvable:$true] %s59
      %65 = dma.hbm_to_vmem [thread:$0]  %s5, 1024, %s60, [#allocation9], 64, 64, 4
    $region25: #{tpu_custom_call.1} parent=1 // pred_fallthru
      _
    // Predicated region
    $region26: #{tpu_custom_call.1} parent=1 // pred_check
      _
    $region27: #{tpu_custom_call.1} parent=1 // pred_check_branch
      %67 = sbr.rel (0) target = $region29
    $region28: #{tpu_custom_call.1} parent=1 // pred_region
      _
    $region29: #{tpu_custom_call.1} parent=1 // pred_fallthru
      _
    // Predicated region
    $region30: #{tpu_custom_call.1} parent=1 // pred_check
      _
    $region31: #{tpu_custom_call.1} parent=1 // pred_check_branch
      %69 = sbr.rel (0) target = $region33
    $region32: #{tpu_custom_call.1} parent=1 // pred_region
      %70 = dma.done [#allocation3], 64
    $region33: #{tpu_custom_call.1} parent=1 // pred_fallthru
      _
    // Predicated region
    $region34: #{tpu_custom_call.1} parent=1 // pred_check
      _
    $region35: #{tpu_custom_call.1} parent=1 // pred_check_branch
      %72 = sbr.rel (0) target = $region37
    $region36: #{tpu_custom_call.1} parent=1 // pred_region
      %73 = dma.done [#allocation6], 128
    $region37: #{tpu_custom_call.1} parent=1 // pred_fallthru
      _
    // Predicated region
    $region38: #{tpu_custom_call.1} parent=1 // pred_check
      _
    $region39: #{tpu_custom_call.1} parent=1 // pred_check_branch
      %75 = sbr.rel (0) target = $region41
    $region40: #{tpu_custom_call.1} parent=1 // pred_region
      %76 = dma.done [#allocation6], 1024
    $region41: #{tpu_custom_call.1} parent=1 // pred_fallthru
      _
    // Predicated region
    $region42: #{tpu_custom_call.1} parent=1 // pred_check
      _
    $region43: #{tpu_custom_call.1} parent=1 // pred_check_branch
      %78 = sbr.rel (0) target = $region45
    $region44: #{tpu_custom_call.1} parent=1 // pred_region
      %79 = dma.done [#allocation9], 1024
    $region45: #{tpu_custom_call.1} parent=1 // pred_fallthru
      _
    %v81 = vld [vmem:[#allocation2] sm:$0xf]
    %v82 = vld [vmem:[#allocation5] sm:$0xf]
    %v83 = vld [vmem:[#allocation5 + $0x4] sm:$0xf]
    %v84 = vld [vmem:[#allocation7] sm:$0xf]
    %v85 = vld [vmem:[#allocation7 + $0x4] sm:$0xf]
    %v86 = vld [vmem:[#allocation7 + $0x8] sm:$0xf]
    %v87 = vld [vmem:[#allocation7 + $0xc] sm:$0xf]
    %v88 = vld [vmem:[#allocation7 + $0x10] sm:$0xf]
    %v89 = vld [vmem:[#allocation7 + $0x14] sm:$0xf]
    %v90 = vld [vmem:[#allocation7 + $0x18] sm:$0xf]
    %v91 = vld [vmem:[#allocation7 + $0x1c] sm:$0xf]
    %v92 = vld [vmem:[#allocation7 + $0x20] sm:$0xf]
    %v93 = vld [vmem:[#allocation7 + $0x24] sm:$0xf]
    %v94 = vld [vmem:[#allocation7 + $0x28] sm:$0xf]
    %v95 = vld [vmem:[#allocation7 + $0x2c] sm:$0xf]
    %v96 = vld [vmem:[#allocation7 + $0x30] sm:$0xf]
    %v97 = vld [vmem:[#allocation7 + $0x34] sm:$0xf]
    %v98 = vld [vmem:[#allocation7 + $0x38] sm:$0xf]
    %v99 = vld [vmem:[#allocation7 + $0x3c] sm:$0xf]
    %v100 = vld [vmem:[#allocation8] sm:$0xf]
    %v101 = vld [vmem:[#allocation8 + $0x4] sm:$0xf]
    %v102 = vld [vmem:[#allocation8 + $0x8] sm:$0xf]
    %v103 = vld [vmem:[#allocation8 + $0xc] sm:$0xf]
    %v104 = vld [vmem:[#allocation8 + $0x10] sm:$0xf]
    %v105 = vld [vmem:[#allocation8 + $0x14] sm:$0xf]
    %v106 = vld [vmem:[#allocation8 + $0x18] sm:$0xf]
    %v107 = vld [vmem:[#allocation8 + $0x1c] sm:$0xf]
    %v108 = vld [vmem:[#allocation8 + $0x20] sm:$0xf]
    %v109 = vld [vmem:[#allocation8 + $0x24] sm:$0xf]
    %v110 = vld [vmem:[#allocation8 + $0x28] sm:$0xf]
    %v111 = vld [vmem:[#allocation8 + $0x2c] sm:$0xf]
    %v112 = vld [vmem:[#allocation8 + $0x30] sm:$0xf]
    %v113 = vld [vmem:[#allocation8 + $0x34] sm:$0xf]
    %v114 = vld [vmem:[#allocation8 + $0x38] sm:$0xf]
    %v115 = vld [vmem:[#allocation8 + $0x3c] sm:$0xf]
    %v116 = vld [vmem:[%s2] sm:$0x1]
    %v118 = vlaneseq
    %v119 = vshrl.u32 %v118, 7
    %v120 = vsub.s32 0, %v119
    %v121 = vrot.slane %v116, %v120
    %v125 = vunpack.c.l.b16 %v82
    %v126 = vunpack.c.l.b16 %v83
    %v127 = vpack.c.b16 %v126, %v125
    %vm129 = vcmask 130048
    %v131 = vsel %vm129, %v81, 0
    %133 = vmatprep.subr.bf16.mxu0 0
    %134 = vmatpush1.bf16.msra.mxu0 %v127
    %135 = vmatprep.subr.bf16.mxu0 0
    %136 = vmatpush1.bf16.msra.mxu0 0
    %137 = vmatprep.subr.bf16.mxu0 0
    %138 = vmatpush1.bf16.msra.mxu0 0
    %139 = vmatprep.subr.bf16.mxu0 0
    %140 = vmatpush1.bf16.msra.mxu0 0
    %141 = vmatprep.subr.bf16.mxu0 0
    %142 = vmatpush1.bf16.msra.mxu0 0
    %143 = vmatprep.subr.bf16.mxu0 0
    %144 = vmatpush1.bf16.msra.mxu0 0
    %145 = vmatprep.subr.bf16.mxu0 0
    %146 = vmatpush1.bf16.msra.mxu0 0
    %147 = vmatprep.subr.bf16.mxu0 0
    %148 = vmatpush1.bf16.msra.mxu0 0
    %149 = vmatprep.subr.bf16.mxu0 0
    %150 = vmatpush1.bf16.msra.mxu0 0
    %151 = vmatprep.subr.bf16.mxu0 0
    %152 = vmatpush1.bf16.msra.mxu0 0
    %153 = vmatprep.subr.bf16.mxu0 0
    %154 = vmatpush1.bf16.msra.mxu0 0
    %155 = vmatprep.subr.bf16.mxu0 0
    %156 = vmatpush1.bf16.msra.mxu0 0
    %157 = vmatprep.subr.bf16.mxu0 0
    %158 = vmatpush1.bf16.msra.mxu0 0
    %159 = vmatprep.subr.bf16.mxu0 0
    %160 = vmatpush1.bf16.msra.mxu0 0
    %161 = vmatprep.subr.bf16.mxu0 0
    %162 = vmatpush1.bf16.msra.mxu0 0
    %163 = vmatprep.subr.bf16.mxu0 0
    %164 = vmatpush1.bf16.msra.mxu0 0
    %165 = vmatprep.mubr.bf16.mxu0 0
    %166 = vmatmul.mubr.bf16.gmra.mrb[0].mxu0 %v131
    %v167 = vpop.f32.mrb[0].mxu0
    %v168 = vadd.f32 %v121, %v167
    %v169 = vpop.f32.mrb[0].mxu0
    %v170 = vpop.f32.mrb[0].mxu0
    %v171 = vpop.f32.mrb[0].mxu0
    %172 = vdwg.mxu0
    %v173 = vmax.f32 %v168, 0.0
    %v174 = vpack.c.bf16 %v173, %v173
    %v175 = vld [vmem:[%s4] sm:$0x1]
    %v177 = vlaneseq
    %v178 = vshrl.u32 %v177, 7
    %v179 = vsub.s32 0, %v178
    %v180 = vrot.slane %v175, %v179
    %v198 = vunpack.c.l.b16 %v84
    %v199 = vunpack.c.l.b16 %v85
    %v200 = vunpack.c.l.b16 %v86
    %v201 = vunpack.c.l.b16 %v87
    %v202 = vunpack.c.l.b16 %v88
    %v203 = vunpack.c.l.b16 %v89
    %v204 = vunpack.c.l.b16 %v90
    %v205 = vunpack.c.l.b16 %v91
    %v206 = vunpack.c.l.b16 %v92
    %v207 = vunpack.c.l.b16 %v93
    %v208 = vunpack.c.l.b16 %v94
    %v209 = vunpack.c.l.b16 %v95
    %v210 = vunpack.c.l.b16 %v96
    %v211 = vunpack.c.l.b16 %v97
    %v212 = vunpack.c.l.b16 %v98
    %v213 = vunpack.c.l.b16 %v99
    %v214 = vpack.c.b16 %v199, %v198
    %v215 = vpack.c.b16 %v201, %v200
    %v216 = vpack.c.b16 %v203, %v202
    %v217 = vpack.c.b16 %v205, %v204
    %v218 = vpack.c.b16 %v207, %v206
    %v219 = vpack.c.b16 %v209, %v208
    %v220 = vpack.c.b16 %v211, %v210
    %v221 = vpack.c.b16 %v213, %v212
    %230 = vmatprep.subr.bf16.mxu0 0
    %231 = vmatpush1.bf16.msra.mxu0 %v214
    %232 = vmatprep.subr.bf16.mxu0 0
    %233 = vmatpush1.bf16.msra.mxu0 %v215
    %234 = vmatprep.subr.bf16.mxu0 0
    %235 = vmatpush1.bf16.msra.mxu0 %v216
    %236 = vmatprep.subr.bf16.mxu0 0
    %237 = vmatpush1.bf16.msra.mxu0 %v217
    %238 = vmatprep.subr.bf16.mxu0 0
    %239 = vmatpush1.bf16.msra.mxu0 %v218
    %240 = vmatprep.subr.bf16.mxu0 0
    %241 = vmatpush1.bf16.msra.mxu0 %v219
    %242 = vmatprep.subr.bf16.mxu0 0
    %243 = vmatpush1.bf16.msra.mxu0 %v220
    %244 = vmatprep.subr.bf16.mxu0 0
    %245 = vmatpush1.bf16.msra.mxu0 %v221
    %246 = vmatprep.subr.bf16.mxu0 0
    %247 = vmatpush1.bf16.msra.mxu0 0
    %248 = vmatprep.subr.bf16.mxu0 0
    %249 = vmatpush1.bf16.msra.mxu0 0
    %250 = vmatprep.subr.bf16.mxu0 0
    %251 = vmatpush1.bf16.msra.mxu0 0
    %252 = vmatprep.subr.bf16.mxu0 0
    %253 = vmatpush1.bf16.msra.mxu0 0
    %254 = vmatprep.subr.bf16.mxu0 0
    %255 = vmatpush1.bf16.msra.mxu0 0
    %256 = vmatprep.subr.bf16.mxu0 0
    %257 = vmatpush1.bf16.msra.mxu0 0
    %258 = vmatprep.subr.bf16.mxu0 0
    %259 = vmatpush1.bf16.msra.mxu0 0
    %260 = vmatprep.subr.bf16.mxu0 0
    %261 = vmatpush1.bf16.msra.mxu0 0
    %262 = vmatprep.mubr.bf16.mxu0 0
    %263 = vmatmul.mubr.bf16.gmra.mrb[0].mxu0 %v174
    %v264 = vpop.f32.mrb[0].mxu0
    %v265 = vadd.f32 %v180, %v264
    %v266 = vpop.f32.mrb[0].mxu0
    %v267 = vpop.f32.mrb[0].mxu0
    %v268 = vpop.f32.mrb[0].mxu0
    %269 = vdwg.mxu0
    %v270 = vmax.f32 %v265, 0.0
    %v271 = vpack.c.bf16 %v270, %v270
    %v272 = vld [vmem:[%s6] sm:$0x1]
    %v274 = vlaneseq
    %v275 = vshrl.u32 %v274, 7
    %v276 = vsub.s32 0, %v275
    %v277 = vrot.slane %v272, %v276
    %v295 = vunpack.c.l.b16 %v100
    %v296 = vunpack.c.l.b16 %v101
    %v297 = vunpack.c.l.b16 %v102
    %v298 = vunpack.c.l.b16 %v103
    %v299 = vunpack.c.l.b16 %v104
    %v300 = vunpack.c.l.b16 %v105
    %v301 = vunpack.c.l.b16 %v106
    %v302 = vunpack.c.l.b16 %v107
    %v303 = vunpack.c.l.b16 %v108
    %v304 = vunpack.c.l.b16 %v109
    %v305 = vunpack.c.l.b16 %v110
    %v306 = vunpack.c.l.b16 %v111
    %v307 = vunpack.c.l.b16 %v112
    %v308 = vunpack.c.l.b16 %v113
    %v309 = vunpack.c.l.b16 %v114
    %v310 = vunpack.c.l.b16 %v115
    %v311 = vpack.c.b16 %v296, %v295
    %v312 = vpack.c.b16 %v298, %v297
    %v313 = vpack.c.b16 %v300, %v299
    %v314 = vpack.c.b16 %v302, %v301
    %v315 = vpack.c.b16 %v304, %v303
    %v316 = vpack.c.b16 %v306, %v305
    %v317 = vpack.c.b16 %v308, %v307
    %v318 = vpack.c.b16 %v310, %v309
    %327 = vmatprep.subr.bf16.mxu0 0
    %328 = vmatpush1.bf16.msra.mxu0 %v311
    %329 = vmatprep.subr.bf16.mxu0 0
    %330 = vmatpush1.bf16.msra.mxu0 %v312
    %331 = vmatprep.subr.bf16.mxu0 0
    %332 = vmatpush1.bf16.msra.mxu0 %v313
    %333 = vmatprep.subr.bf16.mxu0 0
    %334 = vmatpush1.bf16.msra.mxu0 %v314
    %335 = vmatprep.subr.bf16.mxu0 0
    %336 = vmatpush1.bf16.msra.mxu0 %v315
    %337 = vmatprep.subr.bf16.mxu0 0
    %338 = vmatpush1.bf16.msra.mxu0 %v316
    %339 = vmatprep.subr.bf16.mxu0 0
    %340 = vmatpush1.bf16.msra.mxu0 %v317
    %341 = vmatprep.subr.bf16.mxu0 0
    %342 = vmatpush1.bf16.msra.mxu0 %v318
    %343 = vmatprep.subr.bf16.mxu0 0
    %344 = vmatpush1.bf16.msra.mxu0 0
    %345 = vmatprep.subr.bf16.mxu0 0
    %346 = vmatpush1.bf16.msra.mxu0 0
    %347 = vmatprep.subr.bf16.mxu0 0
    %348 = vmatpush1.bf16.msra.mxu0 0
    %349 = vmatprep.subr.bf16.mxu0 0
    %350 = vmatpush1.bf16.msra.mxu0 0
    %351 = vmatprep.subr.bf16.mxu0 0
    %352 = vmatpush1.bf16.msra.mxu0 0
    %353 = vmatprep.subr.bf16.mxu0 0
    %354 = vmatpush1.bf16.msra.mxu0 0
    %355 = vmatprep.subr.bf16.mxu0 0
    %356 = vmatpush1.bf16.msra.mxu0 0
    %357 = vmatprep.subr.bf16.mxu0 0
    %358 = vmatpush1.bf16.msra.mxu0 0
    %359 = vmatprep.mubr.bf16.mxu0 0
    %360 = vmatmul.mubr.bf16.gmra.mrb[0].mxu0 %v271
    %v361 = vpop.f32.mrb[0].mxu0
    %v362 = vadd.f32 %v277, %v361
    %v363 = vpop.f32.mrb[0].mxu0
    %v364 = vpop.f32.mrb[0].mxu0
    %v365 = vpop.f32.mrb[0].mxu0
    %366 = vdwg.mxu0
    %v367 = vlaneseq
    %v368 = vand.u32 %v367, 127
    %v369 = vmax.f32 %v362, -20.0
    %v370 = vmin.f32 %v369, 2.0
    %v371 = vmul.f32 %v370, 1.442695
    %v372 = vpow.pop %v371
    %vm373 = vcmp.ge.s32.totalorder %v368, 64
    %v374 = vsel %vm373, 1, 0
    %vm375 = vcmp.eq.s32.totalorder %v374, 1
    %v376 = vsel %vm375, %v372, %v362
    %377 = vst [vmem:[#allocation10] sm:$0xff] %v376
    // Predicated region
    $region46: #{tpu_custom_call.1} parent=1 // pred_check
      _
    $region47: #{tpu_custom_call.1} parent=1 // pred_check_branch
      %379 = sbr.rel (0) target = $region49
    $region48: #{tpu_custom_call.1} parent=1 // pred_region
      %s381 = ssub.s32 128, 128
      %382 = vsyncadd [#allocation4], %s381
      %s384 = sshll.u32 [#allocation10], 4
      %s385 = int_to_ptr.vmem [resolvable:$true] %s384
      %387 = dma.vmem_to_hbm [thread:$0]  %s385, 128, %s7, [#allocation4]
    $region49: #{tpu_custom_call.1} parent=1 // pred_fallthru
      _
    // Predicated region
    $region50: #{tpu_custom_call.1} parent=1 // pred_check
      _
    $region51: #{tpu_custom_call.1} parent=1 // pred_check_branch
      %389 = sbr.rel (0) target = $region53
    $region52: #{tpu_custom_call.1} parent=1 // pred_region
      %390 = dma.done [#allocation4], 128
    $region53: #{tpu_custom_call.1} parent=1 // pred_fallthru
      _
    %391 = vsyncpa [#allocation3], 1
    %392 = vsyncpa [#allocation6], 1
    %393 = vsyncpa [#allocation9], 1
    %394 = vsyncpa [#allocation4], 1

</llo_original>
